<compile_context>
chip_gen: v5e
topology: v5e:2x2
jax: 0.10.0
libtpu: 0.0.40
codegen_flags: <defaults>
</compile_context>

<pallas_src>
import functools

import jax
import jax.numpy as jnp
from jax.experimental import pallas as pl
from jax.experimental.pallas import tpu as pltpu


# ---------------------------------------------------------------------------
# Fused kernel (built per layer-count; traced once per shape signature)
# ---------------------------------------------------------------------------
def _make_fused_mlp_kernel(n_hidden, has_output_layer):
    """Kernel refs: x, (w, b) * n_hidden, (w_out, b_out)?, out.

    Layout inside the kernel: activations (features, batch_tile), weights
    (out, in), biases (out, 1).  Batch is on the lane axis, so each layer is
    a single MXU matmul W @ h plus a lane-broadcast bias add and a VPU ReLU.
    """

    def kernel(*refs):
        x_ref = refs[0]
        o_ref = refs[-1]

        h = x_ref[...]                                          # (D_in, TB)
        idx = 1
        for _ in range(n_hidden):
            w_ref, b_ref = refs[idx], refs[idx + 1]
            idx += 2
            w = w_ref[...]                                      # (out, in), BN-folded
            # MXU matmul; operands in the weight dtype (f32 or bf16), f32 acc.
            y = jnp.dot(w, h.astype(w.dtype),
                        preferred_element_type=jnp.float32)     # (out, TB) f32
            y = y + b_ref[...]                                  # bias (out, 1) lane-bcast
            h = jnp.maximum(y, 0.0)                             # ReLU (VPU)
            # Dropout: identity in eval mode.

        if has_output_layer:
            w_ref, b_ref = refs[idx], refs[idx + 1]
            w = w_ref[...]                                      # (1, in)
            h = jnp.dot(w, h.astype(w.dtype),
                        preferred_element_type=jnp.float32) + b_ref[...]   # (1, TB)

        o_ref[...] = h.astype(o_ref.dtype)

    return kernel


# ---------------------------------------------------------------------------
# Forward wrapper: BN folding + one fused pallas_call over a batch-tiled grid
# ---------------------------------------------------------------------------
@functools.partial(jax.jit,
                   static_argnames=("eps", "batch_tile", "compute_dtype"))
def mlp_forward(x, hidden_params, out_params, *, eps=1e-5,
                batch_tile=512, compute_dtype=jnp.float32):
    """x: (batch_size, input_dim) float32 -> (batch_size, 1) (or last hidden dim)."""
    B, D_in = x.shape

    # Transposed, lane-dense layout: batch on the lane (last) axis.
    xt = x.T                                                    # (D_in, B)

    # Batch tile: whole batch if small, else a lane-dense multiple of 128.
    tb = B if B <= batch_tile else batch_tile
    n_tiles = pl.cdiv(B, tb)

    inputs = [xt]
    in_specs = [pl.BlockSpec((D_in, tb), lambda i: (0, i))]

    for p in hidden_params:
        # Fold eval-mode BatchNorm1d into the Linear layer (done once, tiny).
        scale = p["gamma"] * jax.lax.rsqrt(p["var"] + eps)      # (out,)
        shift = p["beta"] - p["mean"] * scale                   # (out,)
        w = (p["w"] * scale[:, None]).astype(compute_dtype)     # (out, in)
        b = (p["b"] * scale + shift)[:, None].astype(jnp.float32)   # (out, 1)
        inputs += [w, b]
        # Weights/biases stay VMEM-resident across batch tiles (constant block idx).
        in_specs += [pl.BlockSpec(w.shape, lambda i: (0, 0)),
                     pl.BlockSpec(b.shape, lambda i: (0, 0))]

    if out_params is not None:
        w = out_params["w"].astype(compute_dtype)               # (1, in)
        b = out_params["b"][:, None].astype(jnp.float32)        # (1, 1)
        inputs += [w, b]
        in_specs += [pl.BlockSpec(w.shape, lambda i: (0, 0)),
                     pl.BlockSpec(b.shape, lambda i: (0, 0))]
        out_dim = 1
    else:
        out_dim = hidden_params[-1]["w"].shape[0]

    kernel = _make_fused_mlp_kernel(len(hidden_params), out_params is not None)

    yt = pl.pallas_call(
        kernel,
        out_shape=jax.ShapeDtypeStruct((out_dim, B), x.dtype),
        grid=(n_tiles,),
        in_specs=in_specs,
        out_specs=pl.BlockSpec((out_dim, tb), lambda i: (0, i)),
        compiler_params=pltpu.CompilerParams(
            dimension_semantics=("parallel",)),
    )(*inputs)

    return yt.T                                                 # (B, out_dim)


# ---------------------------------------------------------------------------
# Parameter construction (torch.nn layer shapes) + pure-JAX reference
# ---------------------------------------------------------------------------
def init_mlp_params(key, input_dim, embed_dims, output_layer=True,
                    dtype=jnp.float32):
    """Deterministic synthetic parameters matching torch.nn layer shapes."""
    params = []
    in_dim = input_dim
    for embed_dim in embed_dims:
        key, kw, kb, kg, kbe, km, kv = jax.random.split(key, 7)
        bound = 1.0 / jnp.sqrt(in_dim)
        w = jax.random.uniform(kw, (embed_dim, in_dim), dtype,
                               minval=-bound, maxval=bound)       # torch Linear (out, in)
        b = jax.random.uniform(kb, (embed_dim,), dtype,
                               minval=-bound, maxval=bound)
        gamma = 1.0 + 0.1 * jax.random.normal(kg, (embed_dim,), dtype)
        beta = 0.1 * jax.random.normal(kbe, (embed_dim,), dtype)
        running_mean = 0.1 * jax.random.normal(km, (embed_dim,), dtype)
        running_var = jax.random.uniform(kv, (embed_dim,), dtype,
                                         minval=0.5, maxval=1.5)
        params.append(dict(w=w, b=b, gamma=gamma, beta=beta,
                           mean=running_mean, var=running_var))
        in_dim = embed_dim
    out_params = None
    if output_layer:
        key, kw, kb = jax.random.split(key, 3)
        bound = 1.0 / jnp.sqrt(in_dim)
        w = jax.random.uniform(kw, (1, in_dim), dtype,
                               minval=-bound, maxval=bound)
        b = jax.random.uniform(kb, (1,), dtype, minval=-bound, maxval=bound)
        out_params = dict(w=w, b=b)
    return params, out_params


def mlp_reference(x, hidden_params, out_params, eps=1e-5):
    for p in hidden_params:
        y = x @ p["w"].T + p["b"]
        y = (y - p["mean"]) / jnp.sqrt(p["var"] + eps) * p["gamma"] + p["beta"]
        x = jnp.maximum(y, 0.0)
    if out_params is not None:
        x = x @ out_params["w"].T + out_params["b"]
    return x


if __name__ == "__main__":
    key = jax.random.PRNGKey(0)
    key, kx, kp, kx2 = jax.random.split(key, 4)

    batch_size = 8
    input_dim = 16
    embed_dims = (32, 16)
    dropout = 0.2  # eval mode -> identity

    x = jax.random.normal(kx, (batch_size, input_dim), jnp.float32)
    hidden_params, out_params = init_mlp_params(kp, input_dim, embed_dims,
                                                output_layer=True)

    # Main small-shape run (single tile).
    out = mlp_forward(x, hidden_params, out_params)
    out = jax.block_until_ready(out)

    ref = mlp_reference(x, hidden_params, out_params)
    assert out.shape == (batch_size, 1), out.shape
    # BN-folding reorders a multiply vs. the reference -> allow f32 rounding slack.
    assert jnp.allclose(out, ref, atol=1e-4, rtol=1e-4), (out, ref)

    # Secondary check: multi-tile grid path with a partial last batch tile.
    x2 = jax.random.normal(kx2, (160, input_dim), jnp.float32)
    out2 = jax.block_until_ready(
        mlp_forward(x2, hidden_params, out_params, batch_tile=128))
    ref2 = mlp_reference(x2, hidden_params, out_params)
    assert out2.shape == (160, 1), out2.shape
    assert jnp.allclose(out2, ref2, atol=1e-4, rtol=1e-4)

    print("KERNEL_OK")
</pallas_src>

<mosaic_0001>
module attributes {stable_mosaic.version = 11 : i64} {
  func.func @kernel(%arg0: i32, %arg1: memref<16x8xf32, #tpu.memory_space<vmem>>, %arg2: memref<32x16xf32, #tpu.memory_space<vmem>>, %arg3: memref<32x1xf32, #tpu.memory_space<vmem>>, %arg4: memref<16x32xf32, #tpu.memory_space<vmem>>, %arg5: memref<16x1xf32, #tpu.memory_space<vmem>>, %arg6: memref<1x16xf32, #tpu.memory_space<vmem>>, %arg7: memref<1x1xf32, #tpu.memory_space<vmem>>, %arg8: memref<1x8xf32, #tpu.memory_space<vmem>>) attributes {dimension_semantics = [#tpu.dimension_semantics<parallel>], iteration_bounds = array<i64: 1>, scalar_prefetch = 0 : i64, scratch_operands = 0 : i64, tpu.core_type = #tpu.core_type<tc>, window_params = [{transform_indices = @transform_0, window_bounds = array<i64: 16, 8>}, {pipeline_mode = #tpu.pipeline_mode<synchronous>, transform_indices = @transform_1, window_bounds = array<i64: 32, 16>}, {pipeline_mode = #tpu.pipeline_mode<synchronous>, transform_indices = @transform_2, window_bounds = array<i64: 32, 1>}, {pipeline_mode = #tpu.pipeline_mode<synchronous>, transform_indices = @transform_3, window_bounds = array<i64: 16, 32>}, {pipeline_mode = #tpu.pipeline_mode<synchronous>, transform_indices = @transform_4, window_bounds = array<i64: 16, 1>}, {pipeline_mode = #tpu.pipeline_mode<synchronous>, transform_indices = @transform_5, window_bounds = array<i64: 1, 16>}, {pipeline_mode = #tpu.pipeline_mode<synchronous>, transform_indices = @transform_6, window_bounds = array<i64: 1, 1>}, {transform_indices = @transform_7, window_bounds = array<i64: 1, 8>}]} {
    %c0 = arith.constant 0 : index
    %c0_0 = arith.constant 0 : index
    %0 = vector.load %arg1[%c0, %c0_0] : memref<16x8xf32, #tpu.memory_space<vmem>>, vector<16x8xf32>
    %c0_1 = arith.constant 0 : index
    %c0_2 = arith.constant 0 : index
    %1 = vector.load %arg2[%c0_1, %c0_2] : memref<32x16xf32, #tpu.memory_space<vmem>>, vector<32x16xf32>
    %cst = arith.constant dense<0.000000e+00> : vector<32x8xf32>
    %2 = tpu.matmul %1, %0, %cst {dimension_numbers = #tpu.dot_dimension_numbers<[1], [0], [0], [1], [0, 0, 1, 1], [], []>} : vector<32x16xf32>, vector<16x8xf32>, vector<32x8xf32> -> vector<32x8xf32>
    %c0_3 = arith.constant 0 : index
    %c0_4 = arith.constant 0 : index
    %3 = vector.load %arg3[%c0_3, %c0_4] : memref<32x1xf32, #tpu.memory_space<vmem>>, vector<32x1xf32>
    %4 = vector.broadcast %3 : vector<32x1xf32> to vector<32x8xf32>
    %5 = arith.addf %2, %4 : vector<32x8xf32>
    %cst_5 = arith.constant 0.000000e+00 : f32
    %6 = vector.broadcast %cst_5 : f32 to vector<32x8xf32>
    %7 = arith.maximumf %5, %6 : vector<32x8xf32>
    %c0_6 = arith.constant 0 : index
    %c0_7 = arith.constant 0 : index
    %8 = vector.load %arg4[%c0_6, %c0_7] : memref<16x32xf32, #tpu.memory_space<vmem>>, vector<16x32xf32>
    %cst_8 = arith.constant dense<0.000000e+00> : vector<16x8xf32>
    %9 = tpu.matmul %8, %7, %cst_8 {dimension_numbers = #tpu.dot_dimension_numbers<[1], [0], [0], [1], [0, 0, 1, 1], [], []>} : vector<16x32xf32>, vector<32x8xf32>, vector<16x8xf32> -> vector<16x8xf32>
    %c0_9 = arith.constant 0 : index
    %c0_10 = arith.constant 0 : index
    %10 = vector.load %arg5[%c0_9, %c0_10] : memref<16x1xf32, #tpu.memory_space<vmem>>, vector<16x1xf32>
    %11 = vector.broadcast %10 : vector<16x1xf32> to vector<16x8xf32>
    %12 = arith.addf %9, %11 : vector<16x8xf32>
    %cst_11 = arith.constant 0.000000e+00 : f32
    %13 = vector.broadcast %cst_11 : f32 to vector<16x8xf32>
    %14 = arith.maximumf %12, %13 : vector<16x8xf32>
    %c0_12 = arith.constant 0 : index
    %c0_13 = arith.constant 0 : index
    %15 = vector.load %arg6[%c0_12, %c0_13] : memref<1x16xf32, #tpu.memory_space<vmem>>, vector<1x16xf32>
    %cst_14 = arith.constant dense<0.000000e+00> : vector<1x8xf32>
    %16 = tpu.matmul %15, %14, %cst_14 {dimension_numbers = #tpu.dot_dimension_numbers<[1], [0], [0], [1], [0, 0, 1, 1], [], []>} : vector<1x16xf32>, vector<16x8xf32>, vector<1x8xf32> -> vector<1x8xf32>
    %c0_15 = arith.constant 0 : index
    %c0_16 = arith.constant 0 : index
    %17 = vector.load %arg7[%c0_15, %c0_16] : memref<1x1xf32, #tpu.memory_space<vmem>>, vector<1x1xf32>
    %18 = vector.broadcast %17 : vector<1x1xf32> to vector<1x8xf32>
    %19 = arith.addf %16, %18 : vector<1x8xf32>
    %c0_17 = arith.constant 0 : index
    %c0_18 = arith.constant 0 : index
    %20 = vector.load %arg8[%c0_17, %c0_18] : memref<1x8xf32, #tpu.memory_space<vmem>>, vector<1x8xf32>
    tpu.vector_store %arg8[%c0_17, %c0_18], %19 {strides = array<i32>} : memref<1x8xf32, #tpu.memory_space<vmem>>, vector<1x8xf32>,
    return
  }
  func.func @transform_0(%arg0: i32) -> (i32, i32) {
    %c0_i32 = arith.constant 0 : i32
    %c0_i32_0 = arith.constant 0 : i32
    return %c0_i32, %arg0 : i32, i32
  }
  func.func @transform_1(%arg0: i32) -> (i32, i32) {
    %c0_i32 = arith.constant 0 : i32
    %c0_i32_0 = arith.constant 0 : i32
    %c0_i32_1 = arith.constant 0 : i32
    return %c0_i32, %c0_i32_0 : i32, i32
  }
  func.func @transform_2(%arg0: i32) -> (i32, i32) {
    %c0_i32 = arith.constant 0 : i32
    %c0_i32_0 = arith.constant 0 : i32
    %c0_i32_1 = arith.constant 0 : i32
    return %c0_i32, %c0_i32_0 : i32, i32
  }
  func.func @transform_3(%arg0: i32) -> (i32, i32) {
    %c0_i32 = arith.constant 0 : i32
    %c0_i32_0 = arith.constant 0 : i32
    %c0_i32_1 = arith.constant 0 : i32
    return %c0_i32, %c0_i32_0 : i32, i32
  }
  func.func @transform_4(%arg0: i32) -> (i32, i32) {
    %c0_i32 = arith.constant 0 : i32
    %c0_i32_0 = arith.constant 0 : i32
    %c0_i32_1 = arith.constant 0 : i32
    return %c0_i32, %c0_i32_0 : i32, i32
  }
  func.func @transform_5(%arg0: i32) -> (i32, i32) {
    %c0_i32 = arith.constant 0 : i32
    %c0_i32_0 = arith.constant 0 : i32
    %c0_i32_1 = arith.constant 0 : i32
    return %c0_i32, %c0_i32_0 : i32, i32
  }
  func.func @transform_6(%arg0: i32) -> (i32, i32) {
    %c0_i32 = arith.constant 0 : i32
    %c0_i32_0 = arith.constant 0 : i32
    %c0_i32_1 = arith.constant 0 : i32
    return %c0_i32, %c0_i32_0 : i32, i32
  }
  func.func @transform_7(%arg0: i32) -> (i32, i32) {
    %c0_i32 = arith.constant 0 : i32
    %c0_i32_0 = arith.constant 0 : i32
    return %c0_i32, %arg0 : i32, i32
  }
}

</mosaic_0001>

<llo_original>
// kernel: mlp_forward.1
$region0: #{mlp_forward.1}
  #allocation0 [shape = 'u32[]', space=smem, size = 0x4, offset = 0x4, fixed_abs, tag = 'smem constant byte address 0x4 - core index']
  #allocation1 [shape = 'u32[72,128]{1,0:T(1,128)}', space=vmem, size = 0x9000, scoped, tag = 'internal scratch']
  #allocation2 [shape = 'f32[1,1]{1,0:T(1,128)S(1)}', space=vmem, size = 0x200, scoped, tag = 'scoped memory for mlp_forward.1']
  %s0 = inlined_call_operand.vmem [shape: f32[16,8], index: 0, kind: input, shape index: {}]
  %s1 = inlined_call_operand.vmem [shape: f32[32,16], index: 1, kind: input, shape index: {}]
  %s2 = inlined_call_operand.vmem [shape: f32[32,1], index: 2, kind: input, shape index: {}]
  %s3 = inlined_call_operand.vmem [shape: f32[16,32], index: 3, kind: input, shape index: {}]
  %s4 = inlined_call_operand.vmem [shape: f32[16,1], index: 4, kind: input, shape index: {}]
  %s5 = inlined_call_operand.vmem [shape: f32[1,16], index: 5, kind: input, shape index: {}]
  %s6 = inlined_call_operand.<no memory space> [shape: f32[1,1], index: 6, kind: input, shape index: {}]
  %s7 = inlined_call_operand.hbm [shape: f32[1,8], index: 7, kind: output, shape index: {}]
  %s8 = sld [smem:[#allocation0]]
  $region38: #{mlp_forward.1} parent=0
    _
  %s10 = ssub.s32 1, %s8
  %s11 = scalar_select 0, %s10, %s8
  %v12 = vstv %s6
  %13 = vst [vmem:[#allocation2] sm:$0x1] %v12
  $region1: #{mlp_forward.1} parent=0
    #allocation3 [shape = 'u8[512]{0}', space=vmem, size = 0x400, scoped, tag = 'output window, operand 0, single buffered']
    #allocation4 [shape = 's32[1]{0}', space=sflag, size = 0x4, scoped, tag = 'scoped memory for mlp_forward.1']
    %14 = vsyncpa [#allocation4], 0
    // Predicated region
    $region2: #{mlp_forward.1} parent=1 // pred_check
      _
    $region3: #{mlp_forward.1} parent=1 // pred_check_branch
      %16 = sbr.rel (0) target = $region5
    $region4: #{mlp_forward.1} parent=1 // pred_region
      _
    $region5: #{mlp_forward.1} parent=1 // pred_fallthru
      _
    // Predicated region
    $region6: #{mlp_forward.1} parent=1 // pred_check
      _
    $region7: #{mlp_forward.1} parent=1 // pred_check_branch
      %18 = sbr.rel (0) target = $region9
    $region8: #{mlp_forward.1} parent=1 // pred_region
      _
    $region9: #{mlp_forward.1} parent=1 // pred_fallthru
      _
    // Predicated region
    $region10: #{mlp_forward.1} parent=1 // pred_check
      _
    $region11: #{mlp_forward.1} parent=1 // pred_check_branch
      %20 = sbr.rel (0) target = $region13
    $region12: #{mlp_forward.1} parent=1 // pred_region
      _
    $region13: #{mlp_forward.1} parent=1 // pred_fallthru
      _
    // Predicated region
    $region14: #{mlp_forward.1} parent=1 // pred_check
      _
    $region15: #{mlp_forward.1} parent=1 // pred_check_branch
      %22 = sbr.rel (0) target = $region17
    $region16: #{mlp_forward.1} parent=1 // pred_region
      _
    $region17: #{mlp_forward.1} parent=1 // pred_fallthru
      _
    // Predicated region
    $region18: #{mlp_forward.1} parent=1 // pred_check
      _
    $region19: #{mlp_forward.1} parent=1 // pred_check_branch
      %24 = sbr.rel (0) target = $region21
    $region20: #{mlp_forward.1} parent=1 // pred_region
      _
    $region21: #{mlp_forward.1} parent=1 // pred_fallthru
      _
    // Predicated region
    $region22: #{mlp_forward.1} parent=1 // pred_check
      _
    $region23: #{mlp_forward.1} parent=1 // pred_check_branch
      %26 = sbr.rel (0) target = $region25
    $region24: #{mlp_forward.1} parent=1 // pred_region
      _
    $region25: #{mlp_forward.1} parent=1 // pred_fallthru
      _
    // Predicated region
    $region26: #{mlp_forward.1} parent=1 // pred_check
      _
    $region27: #{mlp_forward.1} parent=1 // pred_check_branch
      %28 = sbr.rel (0) target = $region29
    $region28: #{mlp_forward.1} parent=1 // pred_region
      _
    $region29: #{mlp_forward.1} parent=1 // pred_fallthru
      _
    %v29 = vld [vmem:[%s0] sm:$0xff]
    %v30 = vld [vmem:[%s0 + $0x8] sm:$0xff]
    %v31 = vld [vmem:[%s1] sm:$0xff]
    %v32 = vld [vmem:[%s1 + $0x8] sm:$0xff]
    %v33 = vld [vmem:[%s1 + $0x10] sm:$0xff]
    %v34 = vld [vmem:[%s1 + $0x18] sm:$0xff]
    %v35 = vld [vmem:[%s2] sm:$0xff]
    %v36 = vld [vmem:[%s2 + $0x8] sm:$0xff]
    %v37 = vld [vmem:[%s2 + $0x10] sm:$0xff]
    %v38 = vld [vmem:[%s2 + $0x18] sm:$0xff]
    %40 = vset.pattern.permute.xlu0 0
    %41 = vperm.xlu0 %40, %v35
    %v42 = vpop.permute.xlu0 %41
    %45 = vset.pattern.permute.xlu0 0
    %46 = vperm.xlu0 %45, %v36
    %v47 = vpop.permute.xlu0 %46
    %50 = vset.pattern.permute.xlu0 0
    %51 = vperm.xlu0 %50, %v37
    %v52 = vpop.permute.xlu0 %51
    %55 = vset.pattern.permute.xlu0 0
    %56 = vperm.xlu0 %55, %v38
    %v57 = vpop.permute.xlu0 %56
    %vm59 = vcmask 130048
    %v61 = vsel %vm59, %v31, 0
    %v64 = vsel %vm59, %v32, 0
    %v67 = vsel %vm59, %v33, 0
    %v70 = vsel %vm59, %v34, 0
    %72 = vmatpush.msra.mxu0 0.0
    %73 = vmatpush.msra.mxu0 0.0
    %74 = vmatpush.msra.mxu0 0.0
    %75 = vmatpush.msra.mxu0 0.0
    %76 = vmatpush.msra.mxu0 0.0
    %77 = vmatpush.msra.mxu0 0.0
    %78 = vmatpush.msra.mxu0 0.0
    %79 = vmatpush.msra.mxu0 0.0
    %80 = vmatpush.msra.mxu0 0.0
    %81 = vmatpush.msra.mxu0 0.0
    %82 = vmatpush.msra.mxu0 0.0
    %83 = vmatpush.msra.mxu0 0.0
    %84 = vmatpush.msra.mxu0 0.0
    %85 = vmatpush.msra.mxu0 0.0
    %86 = vmatpush.msra.mxu0 %v30
    %87 = vmatpush.msra.mxu0 %v29
    %88 = vmatmul.f32.gmra.mxu0 %v61
    %v89 = vpop.f32.mrf.mxu0
    %v90 = vadd.f32 %v42, %v89
    %91 = vmatmul.f32.gmra.mxu0 %v64
    %v92 = vpop.f32.mrf.mxu0
    %v93 = vadd.f32 %v47, %v92
    %94 = vmatmul.f32.gmra.mxu0 %v67
    %v95 = vpop.f32.mrf.mxu0
    %v96 = vadd.f32 %v52, %v95
    %97 = vmatmul.f32.gmra.mxu0 %v70
    %v98 = vpop.f32.mrf.mxu0
    %v99 = vadd.f32 %v57, %v98
    %100 = vdwg.mxu0
    %v101 = vmax.f32 %v90, 0.0
    %v102 = vmax.f32 %v93, 0.0
    %v103 = vmax.f32 %v96, 0.0
    %v104 = vmax.f32 %v99, 0.0
    %v105 = vld [vmem:[%s3] sm:$0xff]
    %v106 = vld [vmem:[%s3 + $0x8] sm:$0xff]
    %v107 = vld [vmem:[%s4] sm:$0xff]
    %v108 = vld [vmem:[%s4 + $0x8] sm:$0xff]
    %110 = vset.pattern.permute.xlu0 0
    %111 = vperm.xlu0 %110, %v107
    %v112 = vpop.permute.xlu0 %111
    %115 = vset.pattern.permute.xlu0 0
    %116 = vperm.xlu0 %115, %v108
    %v117 = vpop.permute.xlu0 %116
    %vm119 = vcmask 261120
    %v121 = vsel %vm119, %v105, 0
    %v124 = vsel %vm119, %v106, 0
    %126 = vmatpush.msra.mxu0 0.0
    %127 = vmatpush.msra.mxu0 0.0
    %128 = vmatpush.msra.mxu0 0.0
    %129 = vmatpush.msra.mxu0 0.0
    %130 = vmatpush.msra.mxu0 0.0
    %131 = vmatpush.msra.mxu0 0.0
    %132 = vmatpush.msra.mxu0 0.0
    %133 = vmatpush.msra.mxu0 0.0
    %134 = vmatpush.msra.mxu0 0.0
    %135 = vmatpush.msra.mxu0 0.0
    %136 = vmatpush.msra.mxu0 0.0
    %137 = vmatpush.msra.mxu0 0.0
    %138 = vmatpush.msra.mxu0 %v104
    %139 = vmatpush.msra.mxu0 %v103
    %140 = vmatpush.msra.mxu0 %v102
    %141 = vmatpush.msra.mxu0 %v101
    %142 = vmatmul.f32.gmra.mxu0 %v121
    %v143 = vpop.f32.mrf.mxu0
    %v144 = vadd.f32 %v112, %v143
    %145 = vmatmul.f32.gmra.mxu0 %v124
    %v146 = vpop.f32.mrf.mxu0
    %v147 = vadd.f32 %v117, %v146
    %148 = vdwg.mxu0
    %v149 = vmax.f32 %v144, 0.0
    %v150 = vmax.f32 %v147, 0.0
    %v151 = vld [vmem:[%s5] sm:$0x1]
    %v152 = vld [vmem:[#allocation2] sm:$0x1]
    %154 = vset.pattern.permute.xlu0 0
    %155 = vperm.xlu0 %154, %v152
    %v156 = vpop.permute.xlu0 %155
    %v158 = vperm.slane %v156, 0
    %v160 = vsel %vm59, %v151, 0
    %162 = vmatpush.msra.mxu0 0.0
    %163 = vmatpush.msra.mxu0 0.0
    %164 = vmatpush.msra.mxu0 0.0
    %165 = vmatpush.msra.mxu0 0.0
    %166 = vmatpush.msra.mxu0 0.0
    %167 = vmatpush.msra.mxu0 0.0
    %168 = vmatpush.msra.mxu0 0.0
    %169 = vmatpush.msra.mxu0 0.0
    %170 = vmatpush.msra.mxu0 0.0
    %171 = vmatpush.msra.mxu0 0.0
    %172 = vmatpush.msra.mxu0 0.0
    %173 = vmatpush.msra.mxu0 0.0
    %174 = vmatpush.msra.mxu0 0.0
    %175 = vmatpush.msra.mxu0 0.0
    %176 = vmatpush.msra.mxu0 %v150
    %177 = vmatpush.msra.mxu0 %v149
    %178 = vmatmul.f32.gmra.mxu0 %v160
    %v179 = vpop.f32.mrf.mxu0
    %v180 = vadd.f32 %v158, %v179
    %181 = vdwg.mxu0
    %vm182 = vcmask 57344
    %183 = vst.msk [vmem:[#allocation3] sm:$0x1] %vm182, %v180
    // Predicated region
    $region30: #{mlp_forward.1} parent=1 // pred_check
      _
    $region31: #{mlp_forward.1} parent=1 // pred_check_branch
      %185 = sbr.rel (0) target = $region33
    $region32: #{mlp_forward.1} parent=1 // pred_region
      %187 = vsyncadd [#allocation4], 0
      %s189 = sshll.u32 [#allocation3], 4
      %s190 = int_to_ptr.vmem [resolvable:$true] %s189
      %s191 = sshll.u32 %s7, 4
      %s192 = int_to_ptr.hbm [resolvable:$true] %s191
      %194 = dma.vmem_to_hbm [thread:$0]  %s190, 16, %s192, [#allocation4]
    $region33: #{mlp_forward.1} parent=1 // pred_fallthru
      _
    // Predicated region
    $region34: #{mlp_forward.1} parent=1 // pred_check
      _
    $region35: #{mlp_forward.1} parent=1 // pred_check_branch
      %196 = sbr.rel (0) target = $region37
    $region36: #{mlp_forward.1} parent=1 // pred_region
      %198 = dma.done [#allocation4], 16
    $region37: #{mlp_forward.1} parent=1 // pred_fallthru
      _
    %199 = vsyncpa [#allocation4], 1

</llo_original>
